<compile_context>
chip_gen: v7x
topology: tpu7x:2x2x1
jax: 0.10.0
libtpu: 0.0.40
codegen_flags: <defaults>
</compile_context>

<pallas_src>
import functools
import math

import jax
import jax.numpy as jnp
from jax.experimental import pallas as pl
from jax.experimental.pallas import tpu as pltpu

_LANE = 128
_SUB = 8


def _wbce_kernel(*refs, weighted, w_rows, inv_total):
    if weighted:
        pred_ref, target_ref, w0_ref, w1_ref, out_ref, acc_ref = refs
    else:
        pred_ref, target_ref, out_ref, acc_ref = refs

    i = pl.program_id(1)

    @pl.when(i == 0)
    def _():
        acc_ref[...] = jnp.zeros_like(acc_ref)

    p = pred_ref[...].astype(jnp.float32)
    t = target_ref[...].astype(jnp.float32)

    # PyTorch nn.BCELoss clamps the log terms at -100 for numerical safety.
    log_p = jnp.maximum(jnp.log(p), -100.0)
    log_1mp = jnp.maximum(jnp.log(1.0 - p), -100.0)
    bce = -(t * log_p + (1.0 - t) * log_1mp)

    rows = bce.shape[0]
    if weighted:
        # The per-class weight pattern repeats every `w_rows` rows; the small
        # (w_rows, 128) weight tiles are broadcast over the row-groups, so only a
        # few KiB of weights ever travel over HBM / sit in VMEM.
        g = rows // w_rows
        t3 = t.reshape(g, w_rows, _LANE)
        bce3 = bce.reshape(g, w_rows, _LANE)
        w0 = w0_ref[...][None]
        w1 = w1_ref[...][None]
        # Exact PyTorch semantics: targets that are neither 0 nor 1 get weight 0.
        w = jnp.where(t3 == 1.0, w1, jnp.where(t3 == 0.0, w0, 0.0))
        part = (bce3 * w).sum(axis=0)                       # (w_rows, 128)
        acc_ref[...] += part.reshape(w_rows // _SUB, _SUB, _LANE).sum(axis=0)
    else:
        acc_ref[...] += bce.reshape(rows // _SUB, _SUB, _LANE).sum(axis=0)

    @pl.when(i == pl.num_programs(1) - 1)
    def _():
        # Fold torch.mean's 1/N into the flush (one scalar mul on an (8,128) tile).
        out_ref[0] = acc_ref[...] * inv_total


def _wbce_reference(prediction, target, weights=None, pred_length=4):
    """Pure-JAX reference (also used as the tiny-problem fast path)."""
    p = prediction.astype(jnp.float32)
    t = target.astype(jnp.float32)
    log_p = jnp.maximum(jnp.log(p), -100.0)
    log_1mp = jnp.maximum(jnp.log(1.0 - p), -100.0)
    bce = -(t * log_p + (1.0 - t) * log_1mp)
    if weights is None:
        return jnp.mean(bce)
    w = jnp.asarray(weights).astype(jnp.float32)
    w1 = jnp.tile(w[1, :], pred_length) * (t == 1.0)
    w0 = jnp.tile(w[0, :], pred_length) * (t == 0.0)
    return jnp.mean(bce * (w0 + w1))


def _round_up(x, m):
    return ((x + m - 1) // m) * m


def weighted_bce_loss(prediction, target, weights=None, pred_length=4,
                      *, tile_rows=1024, min_pallas_elements=16384):
    """JAX/Pallas equivalent of WeigthedBCELoss.forward.

    prediction, target: (bs, n_tasks * pred_length), any float dtype.
    weights: (2, n_tasks) array or None.
    """
    bs, n = prediction.shape
    total = bs * n

    # Tiny problems: per-kernel launch + per-step overhead dwarfs the work;
    # let XLA fuse the elementwise + mean instead.
    if total < min_pallas_elements:
        return _wbce_reference(prediction, target, weights, pred_length)

    weighted = weights is not None

    # ---- lane-dense layout & tiling -------------------------------------
    rows_needed = -(-total // _LANE)
    # The per-feature weight pattern has period n in the flat index; the tile height
    # is a multiple of its row-period (so every tile sees the same weight tile) and
    # of 8 (sublane alignment).
    period_rows = (math.lcm(n, _LANE) // _LANE) if weighted else 1
    base = math.lcm(period_rows, _SUB)
    tr = max(base, _round_up(min(tile_rows, _round_up(rows_needed, base)), base))

    total_tiles = -(-rows_needed // tr)
    num_chunks = 2 if total_tiles >= 2 else 1       # one chunk per TensorCore (v7x)
    tiles_per_chunk = -(-total_tiles // num_chunks)
    padded_rows = num_chunks * tiles_per_chunk * tr
    pad = padded_rows * _LANE - total

    p_flat = prediction.reshape(-1)
    t_flat = target.reshape(-1)
    if pad:
        # prediction=1 / target=1 -> BCE contribution is exactly 0.
        p_flat = jnp.pad(p_flat, (0, pad), constant_values=1)
        t_flat = jnp.pad(t_flat, (0, pad), constant_values=1)
    p2 = p_flat.reshape(padded_rows, _LANE)
    t2 = t_flat.reshape(padded_rows, _LANE)

    in_specs = [
        pl.BlockSpec((tr, _LANE), lambda c, i: (c * tiles_per_chunk + i, 0)),
        pl.BlockSpec((tr, _LANE), lambda c, i: (c * tiles_per_chunk + i, 0)),
    ]
    args = [p2, t2]

    w_rows = base
    if weighted:
        w = jnp.asarray(weights).astype(jnp.float32)
        n_tasks = w.shape[1]
        assert n == n_tasks * pred_length, (n, n_tasks, pred_length)
        reps = (w_rows * _LANE) // n                  # exact: base * 128 % n == 0
        w0_tile = jnp.tile(jnp.tile(w[0, :], pred_length), reps).reshape(w_rows, _LANE)
        w1_tile = jnp.tile(jnp.tile(w[1, :], pred_length), reps).reshape(w_rows, _LANE)
        in_specs += [
            pl.BlockSpec((w_rows, _LANE), lambda c, i: (0, 0)),   # constant -> DMA'd once
            pl.BlockSpec((w_rows, _LANE), lambda c, i: (0, 0)),
        ]
        args += [w0_tile, w1_tile]

    partials = pl.pallas_call(
        functools.partial(_wbce_kernel, weighted=weighted, w_rows=w_rows,
                          inv_total=1.0 / float(total)),
        out_shape=jax.ShapeDtypeStruct((num_chunks, _SUB, _LANE), jnp.float32),
        grid=(num_chunks, tiles_per_chunk),
        in_specs=in_specs,
        out_specs=pl.BlockSpec((1, _SUB, _LANE), lambda c, i: (c, 0, 0)),
        scratch_shapes=[pltpu.VMEM((_SUB, _LANE), jnp.float32)],
        compiler_params=pltpu.CompilerParams(
            dimension_semantics=("parallel", "arbitrary")),
    )(*args)

    # Single tiny cross-lane/sublane reduce; 1/N already applied in-kernel (== torch.mean).
    return jnp.sum(partials)


if __name__ == "__main__":
    key = jax.random.PRNGKey(0)
    k1, k2, k3, k4 = jax.random.split(key, 4)

    # --- small demo shapes consistent with the module: (bs, n_tasks * pred_length) ---
    bs, n_tasks, pred_length = 32, 4, 4
    n = n_tasks * pred_length  # 16

    prediction = jax.nn.sigmoid(jax.random.normal(k1, (bs, n), dtype=jnp.float32))
    target = jax.random.bernoulli(k2, 0.5, (bs, n)).astype(jnp.float32)

    # Deterministic (2, n_tasks) class weights: row 0 -> negatives, row 1 -> positives.
    weights = jnp.stack(
        [0.5 + 0.1 * jnp.arange(n_tasks, dtype=jnp.float32),
         1.5 - 0.2 * jnp.arange(n_tasks, dtype=jnp.float32)], axis=0)

    # Force the Pallas path even at this small demo size.
    loss = weighted_bce_loss(prediction, target, weights=weights,
                             pred_length=pred_length, min_pallas_elements=0)
    jax.block_until_ready(loss)
    ref = _wbce_reference(prediction, target, weights, pred_length)
    assert jnp.allclose(loss, ref, rtol=1e-5, atol=1e-6), (loss, ref)

    # weights=None branch (plain mean BCE) through the kernel as well.
    loss_plain = weighted_bce_loss(prediction, target, weights=None,
                                   pred_length=pred_length, min_pallas_elements=0)
    jax.block_until_ready(loss_plain)
    ref_plain = _wbce_reference(prediction, target, None, pred_length)
    assert jnp.allclose(loss_plain, ref_plain, rtol=1e-5, atol=1e-6), (loss_plain, ref_plain)

    # --- medium case: multiple tiles, both grid chunks, padding, masked (-1) targets ---
    bs2, n_tasks2, pred_length2 = 1000, 5, 4
    n2 = n_tasks2 * pred_length2  # 20
    pred2 = jax.nn.sigmoid(jax.random.normal(k3, (bs2, n2), dtype=jnp.float32))
    tgt2 = jax.random.bernoulli(k4, 0.5, (bs2, n2)).astype(jnp.float32)
    tgt2 = tgt2.at[::7, 3].set(-1.0)          # masked entries -> weight 0 (torch semantics)
    weights2 = jnp.stack(
        [0.25 + 0.05 * jnp.arange(n_tasks2, dtype=jnp.float32),
         2.0 - 0.3 * jnp.arange(n_tasks2, dtype=jnp.float32)], axis=0)

    loss2 = weighted_bce_loss(pred2, tgt2, weights=weights2,
                              pred_length=pred_length2,
                              tile_rows=40, min_pallas_elements=0)
    jax.block_until_ready(loss2)
    ref2 = _wbce_reference(pred2, tgt2, weights2, pred_length2)
    assert jnp.allclose(loss2, ref2, rtol=1e-4, atol=1e-6), (loss2, ref2)

    print("KERNEL_OK")
</pallas_src>

<mosaic_0001>
module attributes {stable_mosaic.version = 11 : i64} {
  func.func @_wbce_kernel(%arg0: i32, %arg1: i32, %arg2: memref<8x128xf32, #tpu.memory_space<vmem>>, %arg3: memref<8x128xf32, #tpu.memory_space<vmem>>, %arg4: memref<8x128xf32, #tpu.memory_space<vmem>>, %arg5: memref<8x128xf32, #tpu.memory_space<vmem>>, %arg6: memref<1x8x128xf32, #tpu.memory_space<vmem>>, %arg7: memref<8x128xf32, #tpu.memory_space<vmem>>) attributes {dimension_semantics = [#tpu.dimension_semantics<parallel>, #tpu.dimension_semantics<arbitrary>], iteration_bounds = array<i64: 1, 1>, scalar_prefetch = 0 : i64, scratch_operands = 1 : i64, tpu.core_type = #tpu.core_type<tc>, window_params = [{transform_indices = @transform_0, window_bounds = array<i64: 8, 128>}, {transform_indices = @transform_1, window_bounds = array<i64: 8, 128>}, {pipeline_mode = #tpu.pipeline_mode<synchronous>, transform_indices = @transform_2, window_bounds = array<i64: 8, 128>}, {pipeline_mode = #tpu.pipeline_mode<synchronous>, transform_indices = @transform_3, window_bounds = array<i64: 8, 128>}, {transform_indices = @transform_4, window_bounds = array<i64: 1, 8, 128>}]} {
    %c0_i32 = arith.constant 0 : i32
    %0 = arith.cmpi eq, %arg1, %c0_i32 : i32
    %1 = arith.extui %0 : i1 to i32
    %c0_i32_0 = arith.constant 0 : i32
    %2 = arith.cmpi ne, %1, %c0_i32_0 : i32
    scf.if %2 {
      %cst_23 = arith.constant 0.000000e+00 : f32
      %43 = vector.broadcast %cst_23 : f32 to vector<8x128xf32>
      %c0_24 = arith.constant 0 : index
      %c0_25 = arith.constant 0 : index
      %44 = vector.load %arg7[%c0_24, %c0_25] : memref<8x128xf32, #tpu.memory_space<vmem>>, vector<8x128xf32>
      tpu.vector_store %arg7[%c0_24, %c0_25], %43 {strides = array<i32>} : memref<8x128xf32, #tpu.memory_space<vmem>>, vector<8x128xf32>,
    } else {
    }
    %c0 = arith.constant 0 : index
    %c0_1 = arith.constant 0 : index
    %3 = vector.load %arg2[%c0, %c0_1] : memref<8x128xf32, #tpu.memory_space<vmem>>, vector<8x128xf32>
    %c0_2 = arith.constant 0 : index
    %c0_3 = arith.constant 0 : index
    %4 = vector.load %arg3[%c0_2, %c0_3] : memref<8x128xf32, #tpu.memory_space<vmem>>, vector<8x128xf32>
    %5 = math.log %3 : vector<8x128xf32>
    %cst = arith.constant -1.000000e+02 : f32
    %6 = vector.broadcast %cst : f32 to vector<8x128xf32>
    %7 = arith.maximumf %5, %6 : vector<8x128xf32>
    %cst_4 = arith.constant 1.000000e+00 : f32
    %8 = vector.broadcast %cst_4 : f32 to vector<8x128xf32>
    %9 = arith.subf %8, %3 : vector<8x128xf32>
    %10 = math.log %9 : vector<8x128xf32>
    %cst_5 = arith.constant -1.000000e+02 : f32
    %11 = vector.broadcast %cst_5 : f32 to vector<8x128xf32>
    %12 = arith.maximumf %10, %11 : vector<8x128xf32>
    %13 = arith.mulf %4, %7 : vector<8x128xf32>
    %cst_6 = arith.constant 1.000000e+00 : f32
    %14 = vector.broadcast %cst_6 : f32 to vector<8x128xf32>
    %15 = arith.subf %14, %4 : vector<8x128xf32>
    %16 = arith.mulf %15, %12 : vector<8x128xf32>
    %17 = arith.addf %13, %16 : vector<8x128xf32>
    %cst_7 = arith.constant 0.000000e+00 : f32
    %18 = vector.broadcast %cst_7 : f32 to vector<8x128xf32>
    %19 = arith.subf %18, %17 : vector<8x128xf32>
    %20 = vector.shape_cast %4 : vector<8x128xf32> to vector<1x8x128xf32>
    %21 = vector.shape_cast %19 : vector<8x128xf32> to vector<1x8x128xf32>
    %c0_8 = arith.constant 0 : index
    %c0_9 = arith.constant 0 : index
    %22 = vector.load %arg4[%c0_8, %c0_9] : memref<8x128xf32, #tpu.memory_space<vmem>>, vector<8x128xf32>
    %23 = vector.shape_cast %22 : vector<8x128xf32> to vector<1x8x128xf32>
    %c0_10 = arith.constant 0 : index
    %c0_11 = arith.constant 0 : index
    %24 = vector.load %arg5[%c0_10, %c0_11] : memref<8x128xf32, #tpu.memory_space<vmem>>, vector<8x128xf32>
    %25 = vector.shape_cast %24 : vector<8x128xf32> to vector<1x8x128xf32>
    %cst_12 = arith.constant 1.000000e+00 : f32
    %26 = vector.broadcast %cst_12 : f32 to vector<1x8x128xf32>
    %27 = arith.cmpf oeq, %20, %26 : vector<1x8x128xf32>
    %cst_13 = arith.constant 0.000000e+00 : f32
    %28 = vector.broadcast %cst_13 : f32 to vector<1x8x128xf32>
    %29 = arith.cmpf oeq, %20, %28 : vector<1x8x128xf32>
    %cst_14 = arith.constant 0.000000e+00 : f32
    %30 = vector.broadcast %cst_14 : f32 to vector<1x8x128xf32>
    %31 = arith.select %29, %23, %30 : vector<1x8x128xi1>, vector<1x8x128xf32>
    %32 = arith.select %27, %25, %31 : vector<1x8x128xi1>, vector<1x8x128xf32>
    %33 = arith.mulf %21, %32 : vector<1x8x128xf32>
    %cst_15 = arith.constant dense<0.000000e+00> : vector<8x128xf32>
    %34 = vector.multi_reduction <add>, %33, %cst_15 [0] : vector<1x8x128xf32> to vector<8x128xf32>
    %c0_16 = arith.constant 0 : index
    %c0_17 = arith.constant 0 : index
    %35 = vector.load %arg7[%c0_16, %c0_17] : memref<8x128xf32, #tpu.memory_space<vmem>>, vector<8x128xf32>
    %36 = vector.shape_cast %34 : vector<8x128xf32> to vector<1x8x128xf32>
    %cst_18 = arith.constant dense<0.000000e+00> : vector<8x128xf32>
    %37 = vector.multi_reduction <add>, %36, %cst_18 [0] : vector<1x8x128xf32> to vector<8x128xf32>
    %38 = arith.addf %35, %37 : vector<8x128xf32>
    %c0_19 = arith.constant 0 : index
    %c0_20 = arith.constant 0 : index
    %39 = vector.load %arg7[%c0_19, %c0_20] : memref<8x128xf32, #tpu.memory_space<vmem>>, vector<8x128xf32>
    tpu.vector_store %arg7[%c0_19, %c0_20], %38 {strides = array<i32>} : memref<8x128xf32, #tpu.memory_space<vmem>>, vector<8x128xf32>,
    %c0_i32_21 = arith.constant 0 : i32
    %40 = arith.cmpi eq, %arg1, %c0_i32_21 : i32
    %41 = arith.extui %40 : i1 to i32
    %c0_i32_22 = arith.constant 0 : i32
    %42 = arith.cmpi ne, %41, %c0_i32_22 : i32
    scf.if %42 {
      %c0_23 = arith.constant 0 : index
      %c0_24 = arith.constant 0 : index
      %43 = vector.load %arg7[%c0_23, %c0_24] : memref<8x128xf32, #tpu.memory_space<vmem>>, vector<8x128xf32>
      %cst_25 = arith.constant 0.001953125 : f32
      %44 = vector.broadcast %cst_25 : f32 to vector<8x128xf32>
      %45 = arith.mulf %43, %44 : vector<8x128xf32>
      %c0_26 = arith.constant 0 : index
      %c0_27 = arith.constant 0 : index
      %c0_28 = arith.constant 0 : index
      %46 = vector.load %arg6[%c0_26, %c0_27, %c0_28] : memref<1x8x128xf32, #tpu.memory_space<vmem>>, vector<1x8x128xf32>
      %47 = vector.shape_cast %46 : vector<1x8x128xf32> to vector<8x128xf32>
      %48 = vector.shape_cast %45 : vector<8x128xf32> to vector<1x8x128xf32>
      tpu.vector_store %arg6[%c0_26, %c0_27, %c0_28], %48 {strides = array<i32>} : memref<1x8x128xf32, #tpu.memory_space<vmem>>, vector<1x8x128xf32>,
    } else {
    }
    return
  }
  func.func @transform_0(%arg0: i32, %arg1: i32) -> (i32, i32) {
    %c1_i32 = arith.constant 1 : i32
    %0 = arith.muli %arg0, %c1_i32 : i32
    %1 = arith.addi %0, %arg1 : i32
    %c0_i32 = arith.constant 0 : i32
    %c0_i32_0 = arith.constant 0 : i32
    return %1, %c0_i32 : i32, i32
  }
  func.func @transform_1(%arg0: i32, %arg1: i32) -> (i32, i32) {
    %c1_i32 = arith.constant 1 : i32
    %0 = arith.muli %arg0, %c1_i32 : i32
    %1 = arith.addi %0, %arg1 : i32
    %c0_i32 = arith.constant 0 : i32
    %c0_i32_0 = arith.constant 0 : i32
    return %1, %c0_i32 : i32, i32
  }
  func.func @transform_2(%arg0: i32, %arg1: i32) -> (i32, i32) {
    %c0_i32 = arith.constant 0 : i32
    %c0_i32_0 = arith.constant 0 : i32
    %c0_i32_1 = arith.constant 0 : i32
    return %c0_i32, %c0_i32_0 : i32, i32
  }
  func.func @transform_3(%arg0: i32, %arg1: i32) -> (i32, i32) {
    %c0_i32 = arith.constant 0 : i32
    %c0_i32_0 = arith.constant 0 : i32
    %c0_i32_1 = arith.constant 0 : i32
    return %c0_i32, %c0_i32_0 : i32, i32
  }
  func.func @transform_4(%arg0: i32, %arg1: i32) -> (i32, i32, i32) {
    %c0_i32 = arith.constant 0 : i32
    %c0_i32_0 = arith.constant 0 : i32
    %c0_i32_1 = arith.constant 0 : i32
    return %arg0, %c0_i32, %c0_i32_0 : i32, i32, i32
  }
}

</mosaic_0001>

<llo_original>
// kernel: tpu_custom_call.1
$region0: #{tpu_custom_call.1}
  #allocation0 [shape = 'u32[]', space=smem, size = 0x4, offset = 0x4, fixed_abs, tag = 'smem constant byte address 0x4 - core index']
  #allocation1 [shape = 'u32[144,128]{1,0:T(1,128)}', space=vmem, size = 0x12000, scoped, tag = 'internal scratch']
  #allocation2 [shape = 'f32[8,128]{1,0:T(8,128)}', space=vmem, size = 0x1000, scoped, tag = 'scratch operand']
  %s0 = inlined_call_operand.hbm [shape: f32[8,128], index: 0, kind: input, shape index: {}]
  %s1 = inlined_call_operand.hbm [shape: f32[8,128], index: 1, kind: input, shape index: {}]
  %s2 = inlined_call_operand.hbm [shape: f32[8,128], index: 2, kind: input, shape index: {}]
  %s3 = inlined_call_operand.vmem [shape: f32[8,128], index: 3, kind: input, shape index: {}]
  %s4 = inlined_call_operand.hbm [shape: f32[1,8,128], index: 4, kind: output, shape index: {}]
  %s5 = sld [smem:[#allocation0]]
  $region46: #{tpu_custom_call.1} parent=0
    _
  %s7 = ssub.s32 1, %s5
  %s8 = scalar_select 0, %s7, %s5
  $region1: #{tpu_custom_call.1} parent=0
    #allocation3 [shape = 'u8[4096]{0}', space=vmem, size = 0x1000, scoped, tag = 'input window, operand 0, single buffered']
    #allocation4 [shape = 's32[1]{0}', space=sflag, size = 0x4, scoped, tag = 'scoped memory for tpu_custom_call.1']
    #allocation5 [shape = 's32[1]{0}', space=sflag, size = 0x4, scoped, tag = 'scoped memory for tpu_custom_call.1']
    #allocation6 [shape = 'u8[4096]{0}', space=vmem, size = 0x1000, scoped, tag = 'input window, operand 1, single buffered']
    #allocation7 [shape = 's32[1]{0}', space=sflag, size = 0x4, scoped, tag = 'scoped memory for tpu_custom_call.1']
    #allocation8 [shape = 'u8[4096]{0}', space=vmem, size = 0x1000, scoped, tag = 'input window, operand 2, single buffered']
    #allocation9 [shape = 'u8[4096]{0}', space=vmem, size = 0x1000, scoped, tag = 'output window, operand 0, single buffered']
    %9 = vsyncpa [#allocation4], 0
    %10 = vsyncpa [#allocation7], 0
    %11 = vsyncpa [#allocation5], 0
    // Predicated region
    $region2: #{tpu_custom_call.1} parent=1 // pred_check
      _
    $region3: #{tpu_custom_call.1} parent=1 // pred_check_branch
      %13 = sbr.rel (0) target = $region5
    $region4: #{tpu_custom_call.1} parent=1 // pred_region
      %s14 = sadd.s32 0, 0
      %s16 = ssub.s32 128, 128
      %17 = vsyncadd [#allocation4], %s16
      %s18 = smul.addr %s14, 128
      %s19 = scalar_lea.hbm %s0, %s18
      %s21 = sshll.u32 [#allocation3], 4
      %s22 = int_to_ptr.vmem [resolvable:$true] %s21
      %24 = dma.hbm_to_vmem [thread:$0]  %s19, 128, %s22, [#allocation4]
    $region5: #{tpu_custom_call.1} parent=1 // pred_fallthru
      _
    // Predicated region
    $region6: #{tpu_custom_call.1} parent=1 // pred_check
      _
    $region7: #{tpu_custom_call.1} parent=1 // pred_check_branch
      %26 = sbr.rel (0) target = $region9
    $region8: #{tpu_custom_call.1} parent=1 // pred_region
      %s27 = sadd.s32 0, 0
      %s29 = ssub.s32 128, 128
      %30 = vsyncadd [#allocation7], %s29
      %s31 = smul.addr %s27, 128
      %s32 = scalar_lea.hbm %s1, %s31
      %s34 = sshll.u32 [#allocation6], 4
      %s35 = int_to_ptr.vmem [resolvable:$true] %s34
      %37 = dma.hbm_to_vmem [thread:$0]  %s32, 128, %s35, [#allocation7]
    $region9: #{tpu_custom_call.1} parent=1 // pred_fallthru
      _
    // Predicated region
    $region10: #{tpu_custom_call.1} parent=1 // pred_check
      _
    $region11: #{tpu_custom_call.1} parent=1 // pred_check_branch
      %39 = sbr.rel (0) target = $region13
    $region12: #{tpu_custom_call.1} parent=1 // pred_region
      %s41 = ssub.s32 128, 128
      %42 = vsyncadd [#allocation7], %s41
      %s44 = sshll.u32 [#allocation8], 4
      %s45 = int_to_ptr.vmem [resolvable:$true] %s44
      %47 = dma.hbm_to_vmem [thread:$0]  %s2, 128, %s45, [#allocation7]
    $region13: #{tpu_custom_call.1} parent=1 // pred_fallthru
      _
    // Predicated region
    $region14: #{tpu_custom_call.1} parent=1 // pred_check
      _
    $region15: #{tpu_custom_call.1} parent=1 // pred_check_branch
      %49 = sbr.rel (0) target = $region17
    $region16: #{tpu_custom_call.1} parent=1 // pred_region
      _
    $region17: #{tpu_custom_call.1} parent=1 // pred_fallthru
      _
    // Predicated region
    $region18: #{tpu_custom_call.1} parent=1 // pred_check
      _
    $region19: #{tpu_custom_call.1} parent=1 // pred_check_branch
      %51 = sbr.rel (0) target = $region21
    $region20: #{tpu_custom_call.1} parent=1 // pred_region
      %52 = dma.done [#allocation4], 128
    $region21: #{tpu_custom_call.1} parent=1 // pred_fallthru
      _
    // Predicated region
    $region22: #{tpu_custom_call.1} parent=1 // pred_check
      _
    $region23: #{tpu_custom_call.1} parent=1 // pred_check_branch
      %54 = sbr.rel (0) target = $region25
    $region24: #{tpu_custom_call.1} parent=1 // pred_region
      %55 = dma.done [#allocation7], 128
    $region25: #{tpu_custom_call.1} parent=1 // pred_fallthru
      _
    // Predicated region
    $region26: #{tpu_custom_call.1} parent=1 // pred_check
      _
    $region27: #{tpu_custom_call.1} parent=1 // pred_check_branch
      %57 = sbr.rel (0) target = $region29
    $region28: #{tpu_custom_call.1} parent=1 // pred_region
      %58 = dma.done [#allocation7], 128
    $region29: #{tpu_custom_call.1} parent=1 // pred_fallthru
      _
    %s59 = sadd.s32 0, 0
    %s60 = sadd.s32 0, 0
    %p61 = scmp.eq.s32.totalorder 0, 0
    // Predicated region
    $region30: #{tpu_custom_call.1} parent=1 // pred_check
      %p62 = pneg %p61
    $region31: #{tpu_custom_call.1} parent=1 // pred_check_branch
      %64 = sbr.rel (%p62) target = $region33
    $region32: #{tpu_custom_call.1} parent=1 // pred_region
      %65 = vst [vmem:[#allocation2] sm:$0xff] 0.0
    $region33: #{tpu_custom_call.1} parent=1 // pred_fallthru
      _
    %v66 = vld [vmem:[#allocation3] sm:$0xff]
    %v67 = vld [vmem:[#allocation6] sm:$0xff]
    %v68 = vlog2.pop %v66
    %v69 = vmul.f32 %v68, 0.6931472
    %v70 = vmax.f32 %v69, -100.0
    %v71 = vsub.f32 1.0, %v66
    %v72 = vlog2.pop %v71
    %v73 = vmul.f32 %v72, 0.6931472
    %v74 = vmax.f32 %v73, -100.0
    %v75 = vmul.f32 %v67, %v70
    %v76 = vsub.f32 1.0, %v67
    %v77 = vmul.f32 %v76, %v74
    %v78 = vadd.f32 %v75, %v77
    %v79 = vsub.f32 0.0, %v78
    %v80 = vld [vmem:[#allocation8] sm:$0xff]
    %v81 = vld [vmem:[%s3] sm:$0xff]
    %vm82 = vcmp.eq.f32.partialorder %v67, 1.0
    %vm83 = vcmp.eq.f32.partialorder %v67, 0.0
    %v84 = vsel %vm83, %v80, 0.0
    %v85 = vsel %vm82, %v81, %v84
    %v86 = vmul.f32 %v79, %v85
    %v87 = vadd.f32 %v86, 0.0
    %v88 = vld [vmem:[#allocation2] sm:$0xff]
    %v89 = vadd.f32 %v87, 0.0
    %v90 = vadd.f32 %v88, %v89
    %91 = vst [vmem:[#allocation2] sm:$0xff] %v90
    // Predicated region
    $region34: #{tpu_custom_call.1} parent=1 // pred_check
      %p92 = pneg %p61
    $region35: #{tpu_custom_call.1} parent=1 // pred_check_branch
      %94 = sbr.rel (%p92) target = $region37
    $region36: #{tpu_custom_call.1} parent=1 // pred_region
      %v95 = vld [vmem:[#allocation2] sm:$0xff]
      %v96 = vmul.f32 %v95, 0.001953125
      %97 = vst [vmem:[#allocation9] sm:$0xff] %v96
    $region37: #{tpu_custom_call.1} parent=1 // pred_fallthru
      _
    // Predicated region
    $region38: #{tpu_custom_call.1} parent=1 // pred_check
      _
    $region39: #{tpu_custom_call.1} parent=1 // pred_check_branch
      %99 = sbr.rel (0) target = $region41
    $region40: #{tpu_custom_call.1} parent=1 // pred_region
      %s101 = ssub.s32 128, 128
      %102 = vsyncadd [#allocation5], %s101
      %s104 = sshll.u32 [#allocation9], 4
      %s105 = int_to_ptr.vmem [resolvable:$true] %s104
      %107 = dma.vmem_to_hbm [thread:$0]  %s105, 128, %s4, [#allocation5]
    $region41: #{tpu_custom_call.1} parent=1 // pred_fallthru
      _
    // Predicated region
    $region42: #{tpu_custom_call.1} parent=1 // pred_check
      _
    $region43: #{tpu_custom_call.1} parent=1 // pred_check_branch
      %109 = sbr.rel (0) target = $region45
    $region44: #{tpu_custom_call.1} parent=1 // pred_region
      %110 = dma.done [#allocation5], 128
    $region45: #{tpu_custom_call.1} parent=1 // pred_fallthru
      _
    %111 = vsyncpa [#allocation4], 1
    %112 = vsyncpa [#allocation7], 1
    %113 = vsyncpa [#allocation5], 1

</llo_original>
